<compile_context>
chip_gen: v6e
topology: v6e:2x2x1
jax: 0.10.0
libtpu: 0.0.40
codegen_flags: <defaults>
</compile_context>

<pallas_src>
import functools

import jax
import jax.numpy as jnp
from jax import lax
from jax.experimental import pallas as pl
from jax.experimental.pallas import tpu as pltpu

EPS = 1e-5  # nn.LayerNorm default


def _round_up(x, m):
    return (x + m - 1) // m * m


def _vmem_limit_bytes(*tile_byte_counts):
    # Double-buffered pipeline footprint with 2x headroom, clamped to
    # [default scoped 32 MiB, v7x physical 64 MiB].
    need = 2 * sum(tile_byte_counts)
    return int(min(max(2 * need, 32 * 1024 * 1024), 64 * 1024 * 1024))


# ---------------------- fused LayerNorm + Linear kernel ----------------------
def _prenorm_linear_kernel(x_ref, g_ref, b_ref, w_ref, bias_ref, o_ref, xn_ref):
    # Grid: (row tiles i, output-column tiles j).  The normalized x tile is
    # computed once at j == 0 and cached in VMEM scratch for every j.
    @pl.when(pl.program_id(1) == 0)
    def _():
        x = x_ref[...].astype(jnp.float32)                       # (tm, D)
        inv_d = jnp.float32(1.0 / x.shape[-1])                   # const mul, no divide
        mean = jnp.sum(x, axis=-1, keepdims=True) * inv_d
        centered = x - mean
        var = jnp.sum(centered * centered, axis=-1, keepdims=True) * inv_d
        y = centered * lax.rsqrt(var + EPS)
        y = y * g_ref[...].astype(jnp.float32) + b_ref[...].astype(jnp.float32)
        xn_ref[...] = y.astype(xn_ref.dtype)

    acc = jnp.dot(xn_ref[...], w_ref[...], preferred_element_type=jnp.float32)
    acc = acc + bias_ref[...].astype(jnp.float32)
    o_ref[...] = acc.astype(o_ref.dtype)


def prenorm_linear(x, gamma, beta, w, b, *, row_tile=256, col_tile=512):
    """Fused PreNorm(dim, Linear): Linear(w, b)(LayerNorm(gamma, beta)(x)).

    x: (B, N, D);  w: (D, H);  b: (H,)  ->  (B, N, H)
    """
    B, N, D = x.shape
    H = w.shape[1]
    R = B * N
    x2d = x.reshape(R, D)

    # Row tiling: multiple of 8 sublanes, padded to the tile.
    tm = min(row_tile, _round_up(R, 8))
    R_pad = _round_up(R, tm)
    if R_pad != R:
        x2d = jnp.pad(x2d, ((0, R_pad - R), (0, 0)))

    # Output-column tiling: keeps the double-buffered W tile small (v7x VMEM).
    tn = min(col_tile, H)
    H_pad = _round_up(H, tn)
    if H_pad != H:
        w = jnp.pad(w, ((0, 0), (0, H_pad - H)))
        b = jnp.pad(b, ((0, H_pad - H),))

    g2d = gamma.reshape(1, D)
    be2d = beta.reshape(1, D)
    bias2d = b.reshape(1, H_pad)

    itemsize = jnp.dtype(x.dtype).itemsize
    limit = _vmem_limit_bytes(
        tm * D * itemsize,        # x tile
        D * tn * itemsize,        # W tile
        tm * tn * itemsize,       # out tile
        tm * D * itemsize,        # normalized-x scratch (single-buffered)
    )

    out2d = pl.pallas_call(
        _prenorm_linear_kernel,
        out_shape=jax.ShapeDtypeStruct((R_pad, H_pad), x.dtype),
        grid_spec=pltpu.PrefetchScalarGridSpec(
            num_scalar_prefetch=0,
            grid=(R_pad // tm, H_pad // tn),
            in_specs=[
                pl.BlockSpec((tm, D), lambda i, j: (i, 0)),    # x row tile
                pl.BlockSpec((1, D), lambda i, j: (0, 0)),     # gamma (resident)
                pl.BlockSpec((1, D), lambda i, j: (0, 0)),     # beta  (resident)
                pl.BlockSpec((D, tn), lambda i, j: (0, j)),    # W column tile
                pl.BlockSpec((1, tn), lambda i, j: (0, j)),    # bias column tile
            ],
            out_specs=pl.BlockSpec((tm, tn), lambda i, j: (i, j)),
            scratch_shapes=[pltpu.VMEM((tm, D), x.dtype)],     # cached normed x
        ),
        compiler_params=pltpu.CompilerParams(
            dimension_semantics=("parallel", "arbitrary"),
            vmem_limit_bytes=limit),
    )(x2d, g2d, be2d, w, bias2d)

    return out2d[:R, :H].reshape(B, N, H)


# ------------------ standalone LayerNorm kernel (generic fn) ------------------
def _layernorm_kernel(x_ref, g_ref, b_ref, o_ref):
    x = x_ref[...].astype(jnp.float32)                           # (tm, D)
    inv_d = jnp.float32(1.0 / x.shape[-1])
    mean = jnp.sum(x, axis=-1, keepdims=True) * inv_d
    centered = x - mean
    var = jnp.sum(centered * centered, axis=-1, keepdims=True) * inv_d
    y = centered * lax.rsqrt(var + EPS)
    y = y * g_ref[...].astype(jnp.float32) + b_ref[...].astype(jnp.float32)
    o_ref[...] = y.astype(o_ref.dtype)


def layernorm(x2d, gamma, beta, *, row_tile=256):
    """x2d: (R, D) tokens-by-features; gamma/beta: (D,)."""
    R, D = x2d.shape
    tm = min(row_tile, _round_up(R, 8))
    R_pad = _round_up(R, tm)
    xp = jnp.pad(x2d, ((0, R_pad - R), (0, 0))) if R_pad != R else x2d

    itemsize = jnp.dtype(x2d.dtype).itemsize
    limit = _vmem_limit_bytes(2 * tm * D * itemsize)

    out = pl.pallas_call(
        _layernorm_kernel,
        out_shape=jax.ShapeDtypeStruct((R_pad, D), x2d.dtype),
        grid_spec=pltpu.PrefetchScalarGridSpec(
            num_scalar_prefetch=0,
            grid=(R_pad // tm,),
            in_specs=[
                pl.BlockSpec((tm, D), lambda i: (i, 0)),
                pl.BlockSpec((1, D), lambda i: (0, 0)),
                pl.BlockSpec((1, D), lambda i: (0, 0)),
            ],
            out_specs=pl.BlockSpec((tm, D), lambda i: (i, 0)),
        ),
        compiler_params=pltpu.CompilerParams(
            dimension_semantics=("parallel",),
            vmem_limit_bytes=limit),
    )(xp, gamma.reshape(1, D), beta.reshape(1, D))
    return out[:R]


def pre_norm(x, gamma, beta, fn):
    """Generic PreNorm.forward: fn(LayerNorm(x)) for an arbitrary `fn`.

    Prefer `prenorm_linear` when fn is a Linear: it fuses the matmul into the
    same kernel and skips the HBM round-trip of the normalized activations.
    """
    B, N, D = x.shape
    normed = layernorm(x.reshape(B * N, D), gamma, beta)
    out2d = fn(normed)
    return out2d.reshape(B, N, out2d.shape[-1])


# --------------------------------- reference ---------------------------------
def _ref_prenorm_linear(x, gamma, beta, w, b):
    xf = x.astype(jnp.float32)
    mean = jnp.mean(xf, axis=-1, keepdims=True)
    var = jnp.mean((xf - mean) ** 2, axis=-1, keepdims=True)
    y = (xf - mean) * lax.rsqrt(var + EPS) * gamma + beta
    return jnp.dot(y, w, preferred_element_type=jnp.float32) + b


if __name__ == "__main__":
    key = jax.random.PRNGKey(0)
    # Small but lane-dense shapes (D, H multiples of 128 -> unmasked stores).
    B, N, D, H = 2, 8, 128, 256

    kx, kg, kb, kw, kb2 = jax.random.split(key, 5)
    x = jax.random.normal(kx, (B, N, D), dtype=jnp.float32)
    gamma = 1.0 + 0.1 * jax.random.normal(kg, (D,), dtype=jnp.float32)
    beta = 0.1 * jax.random.normal(kb, (D,), dtype=jnp.float32)
    w = 0.02 * jax.random.normal(kw, (D, H), dtype=jnp.float32)
    b_lin = 0.02 * jax.random.normal(kb2, (H,), dtype=jnp.float32)

    # Fused PreNorm(dim, Linear) path.
    out = prenorm_linear(x, gamma, beta, w, b_lin)
    out = jax.block_until_ready(out)
    ref = _ref_prenorm_linear(x, gamma, beta, w, b_lin)
    assert out.shape == (B, N, H), out.shape
    assert jnp.allclose(out, ref, atol=2e-3, rtol=2e-3), (
        float(jnp.max(jnp.abs(out - ref))))

    # Generic-`fn` path: standalone LayerNorm kernel (identity fn here).
    normed = jax.block_until_ready(pre_norm(x, gamma, beta, lambda y: y))
    xf = x.astype(jnp.float32)
    mean = jnp.mean(xf, axis=-1, keepdims=True)
    var = jnp.mean((xf - mean) ** 2, axis=-1, keepdims=True)
    ln_ref = (xf - mean) * lax.rsqrt(var + EPS) * gamma + beta
    assert jnp.allclose(normed, ln_ref, atol=1e-4, rtol=1e-4), (
        float(jnp.max(jnp.abs(normed - ln_ref))))

    print("KERNEL_OK")
</pallas_src>

<mosaic_0001>
module attributes {stable_mosaic.version = 11 : i64} {
  func.func @_prenorm_linear_kernel(%arg0: i32, %arg1: i32, %arg2: memref<16x128xf32, #tpu.memory_space<vmem>>, %arg3: memref<1x128xf32, #tpu.memory_space<vmem>>, %arg4: memref<1x128xf32, #tpu.memory_space<vmem>>, %arg5: memref<128x256xf32, #tpu.memory_space<vmem>>, %arg6: memref<1x256xf32, #tpu.memory_space<vmem>>, %arg7: memref<16x256xf32, #tpu.memory_space<vmem>>, %arg8: memref<16x128xf32, #tpu.memory_space<vmem>>) attributes {dimension_semantics = [#tpu.dimension_semantics<parallel>, #tpu.dimension_semantics<arbitrary>], iteration_bounds = array<i64: 1, 1>, scalar_prefetch = 0 : i64, scratch_operands = 1 : i64, tpu.core_type = #tpu.core_type<tc>, window_params = [{transform_indices = @transform_0, window_bounds = array<i64: 16, 128>}, {pipeline_mode = #tpu.pipeline_mode<synchronous>, transform_indices = @transform_1, window_bounds = array<i64: 1, 128>}, {pipeline_mode = #tpu.pipeline_mode<synchronous>, transform_indices = @transform_2, window_bounds = array<i64: 1, 128>}, {transform_indices = @transform_3, window_bounds = array<i64: 128, 256>}, {transform_indices = @transform_4, window_bounds = array<i64: 1, 256>}, {transform_indices = @transform_5, window_bounds = array<i64: 16, 256>}]} {
    %c0_i32 = arith.constant 0 : i32
    %0 = arith.cmpi eq, %arg1, %c0_i32 : i32
    %1 = arith.extui %0 : i1 to i32
    %c0_i32_0 = arith.constant 0 : i32
    %2 = arith.cmpi ne, %1, %c0_i32_0 : i32
    scf.if %2 {
      %c0_8 = arith.constant 0 : index
      %c0_9 = arith.constant 0 : index
      %10 = vector.load %arg2[%c0_8, %c0_9] : memref<16x128xf32, #tpu.memory_space<vmem>>, vector<16x128xf32>
      %cst_10 = arith.constant dense<0.000000e+00> : vector<16xf32>
      %11 = vector.multi_reduction <add>, %10, %cst_10 [1] : vector<16x128xf32> to vector<16xf32>
      %12 = vector.shape_cast %11 : vector<16xf32> to vector<16x1xf32>
      %cst_11 = arith.constant 7.812500e-03 : f32
      %13 = vector.broadcast %cst_11 : f32 to vector<16x1xf32>
      %14 = arith.mulf %12, %13 : vector<16x1xf32>
      %15 = vector.broadcast %14 : vector<16x1xf32> to vector<16x128xf32>
      %16 = arith.subf %10, %15 : vector<16x128xf32>
      %17 = arith.mulf %16, %16 : vector<16x128xf32>
      %cst_12 = arith.constant dense<0.000000e+00> : vector<16xf32>
      %18 = vector.multi_reduction <add>, %17, %cst_12 [1] : vector<16x128xf32> to vector<16xf32>
      %19 = vector.shape_cast %18 : vector<16xf32> to vector<16x1xf32>
      %cst_13 = arith.constant 7.812500e-03 : f32
      %20 = vector.broadcast %cst_13 : f32 to vector<16x1xf32>
      %21 = arith.mulf %19, %20 : vector<16x1xf32>
      %cst_14 = arith.constant 9.99999974E-6 : f32
      %22 = vector.broadcast %cst_14 : f32 to vector<16x1xf32>
      %23 = arith.addf %21, %22 : vector<16x1xf32>
      %24 = math.rsqrt %23 : vector<16x1xf32>
      %25 = vector.broadcast %24 : vector<16x1xf32> to vector<16x128xf32>
      %26 = arith.mulf %16, %25 : vector<16x128xf32>
      %c0_15 = arith.constant 0 : index
      %c0_16 = arith.constant 0 : index
      %27 = vector.load %arg3[%c0_15, %c0_16] : memref<1x128xf32, #tpu.memory_space<vmem>>, vector<1x128xf32>
      %28 = vector.broadcast %27 : vector<1x128xf32> to vector<16x128xf32>
      %29 = arith.mulf %26, %28 : vector<16x128xf32>
      %c0_17 = arith.constant 0 : index
      %c0_18 = arith.constant 0 : index
      %30 = vector.load %arg4[%c0_17, %c0_18] : memref<1x128xf32, #tpu.memory_space<vmem>>, vector<1x128xf32>
      %31 = vector.broadcast %30 : vector<1x128xf32> to vector<16x128xf32>
      %32 = arith.addf %29, %31 : vector<16x128xf32>
      %c0_19 = arith.constant 0 : index
      %c0_20 = arith.constant 0 : index
      %33 = vector.load %arg8[%c0_19, %c0_20] : memref<16x128xf32, #tpu.memory_space<vmem>>, vector<16x128xf32>
      tpu.vector_store %arg8[%c0_19, %c0_20], %32 {strides = array<i32>} : memref<16x128xf32, #tpu.memory_space<vmem>>, vector<16x128xf32>,
    } else {
    }
    %c0 = arith.constant 0 : index
    %c0_1 = arith.constant 0 : index
    %3 = vector.load %arg8[%c0, %c0_1] : memref<16x128xf32, #tpu.memory_space<vmem>>, vector<16x128xf32>
    %c0_2 = arith.constant 0 : index
    %c0_3 = arith.constant 0 : index
    %4 = vector.load %arg5[%c0_2, %c0_3] : memref<128x256xf32, #tpu.memory_space<vmem>>, vector<128x256xf32>
    %cst = arith.constant dense<0.000000e+00> : vector<16x256xf32>
    %5 = tpu.matmul %3, %4, %cst {dimension_numbers = #tpu.dot_dimension_numbers<[1], [0], [0], [1], [0, 0, 1, 1], [], []>} : vector<16x128xf32>, vector<128x256xf32>, vector<16x256xf32> -> vector<16x256xf32>
    %c0_4 = arith.constant 0 : index
    %c0_5 = arith.constant 0 : index
    %6 = vector.load %arg6[%c0_4, %c0_5] : memref<1x256xf32, #tpu.memory_space<vmem>>, vector<1x256xf32>
    %7 = vector.broadcast %6 : vector<1x256xf32> to vector<16x256xf32>
    %8 = arith.addf %5, %7 : vector<16x256xf32>
    %c0_6 = arith.constant 0 : index
    %c0_7 = arith.constant 0 : index
    %9 = vector.load %arg7[%c0_6, %c0_7] : memref<16x256xf32, #tpu.memory_space<vmem>>, vector<16x256xf32>
    tpu.vector_store %arg7[%c0_6, %c0_7], %8 {strides = array<i32>} : memref<16x256xf32, #tpu.memory_space<vmem>>, vector<16x256xf32>,
    return
  }
  func.func @transform_0(%arg0: i32, %arg1: i32) -> (i32, i32) {
    %c0_i32 = arith.constant 0 : i32
    %c0_i32_0 = arith.constant 0 : i32
    return %arg0, %c0_i32 : i32, i32
  }
  func.func @transform_1(%arg0: i32, %arg1: i32) -> (i32, i32) {
    %c0_i32 = arith.constant 0 : i32
    %c0_i32_0 = arith.constant 0 : i32
    %c0_i32_1 = arith.constant 0 : i32
    return %c0_i32, %c0_i32_0 : i32, i32
  }
  func.func @transform_2(%arg0: i32, %arg1: i32) -> (i32, i32) {
    %c0_i32 = arith.constant 0 : i32
    %c0_i32_0 = arith.constant 0 : i32
    %c0_i32_1 = arith.constant 0 : i32
    return %c0_i32, %c0_i32_0 : i32, i32
  }
  func.func @transform_3(%arg0: i32, %arg1: i32) -> (i32, i32) {
    %c0_i32 = arith.constant 0 : i32
    %c0_i32_0 = arith.constant 0 : i32
    return %c0_i32, %arg1 : i32, i32
  }
  func.func @transform_4(%arg0: i32, %arg1: i32) -> (i32, i32) {
    %c0_i32 = arith.constant 0 : i32
    %c0_i32_0 = arith.constant 0 : i32
    return %c0_i32, %arg1 : i32, i32
  }
  func.func @transform_5(%arg0: i32, %arg1: i32) -> (i32, i32) {
    %c0_i32 = arith.constant 0 : i32
    return %arg0, %arg1 : i32, i32
  }
}

</mosaic_0001>

<llo_original>
// kernel: tpu_custom_call.1
$region0: #{tpu_custom_call.1}
  #allocation0 [shape = 'u32[]', space=smem, size = 0x4, offset = 0x4, fixed_abs, tag = 'smem constant byte address 0x4 - core index']
  #allocation1 [shape = 'u32[144,128]{1,0:T(1,128)}', space=vmem, size = 0x12000, scoped, tag = 'internal scratch']
  #allocation2 [shape = 'f32[16,128]{1,0:T(8,128)}', space=vmem, size = 0x2000, scoped, tag = 'scratch operand']
  %s0 = inlined_call_operand.hbm [shape: f32[16,128], index: 0, kind: input, shape index: {}]
  %s1 = inlined_call_operand.vmem [shape: f32[1,128], index: 1, kind: input, shape index: {}]
  %s2 = inlined_call_operand.hbm [shape: f32[1,128], index: 2, kind: input, shape index: {}]
  %s3 = inlined_call_operand.hbm [shape: f32[128,256], index: 3, kind: input, shape index: {}]
  %s4 = inlined_call_operand.vmem [shape: f32[1,256], index: 4, kind: input, shape index: {}]
  %s5 = inlined_call_operand.hbm [shape: f32[16,256], index: 5, kind: output, shape index: {}]
  %s6 = sld [smem:[#allocation0]]
  $region46: #{tpu_custom_call.1} parent=0
    _
  %s8 = ssub.s32 1, %s6
  %s9 = scalar_select 0, %s8, %s6
  $region1: #{tpu_custom_call.1} parent=0
    #allocation3 [shape = 'u8[8192]{0}', space=vmem, size = 0x2000, scoped, tag = 'input window, operand 0, single buffered']
    #allocation4 [shape = 's32[1]{0}', space=sflag, size = 0x4, scoped, tag = 'scoped memory for tpu_custom_call.1']
    #allocation5 [shape = 's32[1]{0}', space=sflag, size = 0x4, scoped, tag = 'scoped memory for tpu_custom_call.1']
    #allocation6 [shape = 'u8[512]{0}', space=vmem, size = 0x400, scoped, tag = 'input window, operand 2, single buffered']
    #allocation7 [shape = 's32[1]{0}', space=sflag, size = 0x4, scoped, tag = 'scoped memory for tpu_custom_call.1']
    #allocation8 [shape = 'u8[131072]{0}', space=vmem, size = 0x20000, scoped, tag = 'input window, operand 3, single buffered']
    #allocation9 [shape = 'u8[16384]{0}', space=vmem, size = 0x4000, scoped, tag = 'output window, operand 0, single buffered']
    %10 = vsyncpa [#allocation4], 0
    %11 = vsyncpa [#allocation7], 0
    %12 = vsyncpa [#allocation5], 0
    // Predicated region
    $region2: #{tpu_custom_call.1} parent=1 // pred_check
      _
    $region3: #{tpu_custom_call.1} parent=1 // pred_check_branch
      %14 = sbr.rel (0) target = $region5
    $region4: #{tpu_custom_call.1} parent=1 // pred_region
      %s16 = ssub.s32 256, 256
      %17 = vsyncadd [#allocation4], %s16
      %s18 = sshll.u32 [#allocation3], 4
      %s19 = int_to_ptr.vmem [resolvable:$true] %s18
      %24 = dma.hbm_to_vmem [thread:$0]  %s0, 256, %s19, [#allocation4], 128, 128, 8
    $region5: #{tpu_custom_call.1} parent=1 // pred_fallthru
      _
    // Predicated region
    $region6: #{tpu_custom_call.1} parent=1 // pred_check
      _
    $region7: #{tpu_custom_call.1} parent=1 // pred_check_branch
      %26 = sbr.rel (0) target = $region9
    $region8: #{tpu_custom_call.1} parent=1 // pred_region
      _
    $region9: #{tpu_custom_call.1} parent=1 // pred_fallthru
      _
    // Predicated region
    $region10: #{tpu_custom_call.1} parent=1 // pred_check
      _
    $region11: #{tpu_custom_call.1} parent=1 // pred_check_branch
      %28 = sbr.rel (0) target = $region13
    $region12: #{tpu_custom_call.1} parent=1 // pred_region
      %s30 = ssub.s32 16, 16
      %31 = vsyncadd [#allocation7], %s30
      %s33 = sshll.u32 [#allocation6], 4
      %s34 = int_to_ptr.vmem [resolvable:$true] %s33
      %36 = dma.hbm_to_vmem [thread:$0]  %s2, 16, %s34, [#allocation7]
    $region13: #{tpu_custom_call.1} parent=1 // pred_fallthru
      _
    // Predicated region
    $region14: #{tpu_custom_call.1} parent=1 // pred_check
      _
    $region15: #{tpu_custom_call.1} parent=1 // pred_check_branch
      %38 = sbr.rel (0) target = $region17
    $region16: #{tpu_custom_call.1} parent=1 // pred_region
      %s40 = ssub.s32 4096, 4096
      %41 = vsyncadd [#allocation7], %s40
      %s42 = sshll.u32 [#allocation8], 4
      %s43 = int_to_ptr.vmem [resolvable:$true] %s42
      %48 = dma.hbm_to_vmem [thread:$0]  %s3, 4096, %s43, [#allocation7], 256, 256, 16
    $region17: #{tpu_custom_call.1} parent=1 // pred_fallthru
      _
    // Predicated region
    $region18: #{tpu_custom_call.1} parent=1 // pred_check
      _
    $region19: #{tpu_custom_call.1} parent=1 // pred_check_branch
      %50 = sbr.rel (0) target = $region21
    $region20: #{tpu_custom_call.1} parent=1 // pred_region
      _
    $region21: #{tpu_custom_call.1} parent=1 // pred_fallthru
      _
    // Predicated region
    $region22: #{tpu_custom_call.1} parent=1 // pred_check
      _
    $region23: #{tpu_custom_call.1} parent=1 // pred_check_branch
      %52 = sbr.rel (0) target = $region25
    $region24: #{tpu_custom_call.1} parent=1 // pred_region
      %53 = dma.done [#allocation4], 256
    $region25: #{tpu_custom_call.1} parent=1 // pred_fallthru
      _
    // Predicated region
    $region26: #{tpu_custom_call.1} parent=1 // pred_check
      _
    $region27: #{tpu_custom_call.1} parent=1 // pred_check_branch
      %55 = sbr.rel (0) target = $region29
    $region28: #{tpu_custom_call.1} parent=1 // pred_region
      %56 = dma.done [#allocation7], 16
    $region29: #{tpu_custom_call.1} parent=1 // pred_fallthru
      _
    // Predicated region
    $region30: #{tpu_custom_call.1} parent=1 // pred_check
      _
    $region31: #{tpu_custom_call.1} parent=1 // pred_check_branch
      %58 = sbr.rel (0) target = $region33
    $region32: #{tpu_custom_call.1} parent=1 // pred_region
      %59 = dma.done [#allocation7], 4096
    $region33: #{tpu_custom_call.1} parent=1 // pred_fallthru
      _
    %p60 = scmp.eq.s32.totalorder 0, 0
    // Predicated region
    $region34: #{tpu_custom_call.1} parent=1 // pred_check
      %p61 = pneg %p60
    $region35: #{tpu_custom_call.1} parent=1 // pred_check_branch
      %63 = sbr.rel (%p61) target = $region37
    $region36: #{tpu_custom_call.1} parent=1 // pred_region
      %v64 = vld [vmem:[#allocation3] sm:$0xff]
      %v65 = vld [vmem:[#allocation3 + $0x8] sm:$0xff]
      %66 = vadd.xlane.f32.xlu0 %v64
      %v67 = vpop.xlane.xlu0 %66
      %68 = vadd.xlane.f32.xlu0 %v65
      %v69 = vpop.xlane.xlu0 %68
      %v70 = vmul.f32 %v67, 0.0078125
      %v71 = vmul.f32 %v69, 0.0078125
      %v72 = vsub.f32 %v64, %v70
      %v73 = vsub.f32 %v65, %v71
      %v74 = vmul.f32 %v72, %v72
      %v75 = vmul.f32 %v73, %v73
      %76 = vadd.xlane.f32.xlu0 %v74
      %v77 = vpop.xlane.xlu0 %76
      %78 = vadd.xlane.f32.xlu0 %v75
      %v79 = vpop.xlane.xlu0 %78
      %v80 = vmul.f32 %v77, 0.0078125
      %v81 = vmul.f32 %v79, 0.0078125
      %v82 = vadd.f32 %v80, 1e-05
      %v83 = vadd.f32 %v81, 1e-05
      %v84 = vrsqrt.pop %v82
      %v85 = vrsqrt.pop %v83
      %v86 = vmul.f32 %v72, %v84
      %v87 = vmul.f32 %v73, %v85
      %v88 = vld [vmem:[%s1] sm:$0x1]
      %v90 = vlaneseq
      %v91 = vshrl.u32 %v90, 7
      %v92 = vsub.s32 0, %v91
      %v93 = vrot.slane %v88, %v92
      %v95 = vmul.f32 %v86, %v93
      %v96 = vmul.f32 %v87, %v93
      %v97 = vld [vmem:[#allocation6] sm:$0x1]
      %v99 = vlaneseq
      %v100 = vshrl.u32 %v99, 7
      %v101 = vsub.s32 0, %v100
      %v102 = vrot.slane %v97, %v101
      %v104 = vadd.f32 %v95, %v102
      %v105 = vadd.f32 %v96, %v102
      %106 = vst [vmem:[#allocation2] sm:$0xff] %v104
      %107 = vst [vmem:[#allocation2 + $0x8] sm:$0xff] %v105
    $region37: #{tpu_custom_call.1} parent=1 // pred_fallthru
      _
    %v108 = vld [vmem:[#allocation2] sm:$0xff]
    %v109 = vld [vmem:[#allocation2 + $0x8] sm:$0xff]
    %v110 = vld [vmem:[#allocation8] sm:$0xff]
    %v111 = vld [vmem:[#allocation8 + $0x8] sm:$0xff]
    %v112 = vld [vmem:[#allocation8 + $0x10] sm:$0xff]
    %v113 = vld [vmem:[#allocation8 + $0x18] sm:$0xff]
    %v114 = vld [vmem:[#allocation8 + $0x20] sm:$0xff]
    %v115 = vld [vmem:[#allocation8 + $0x28] sm:$0xff]
    %v116 = vld [vmem:[#allocation8 + $0x30] sm:$0xff]
    %v117 = vld [vmem:[#allocation8 + $0x38] sm:$0xff]
    %v118 = vld [vmem:[#allocation8 + $0x40] sm:$0xff]
    %v119 = vld [vmem:[#allocation8 + $0x48] sm:$0xff]
    %v120 = vld [vmem:[#allocation8 + $0x50] sm:$0xff]
    %v121 = vld [vmem:[#allocation8 + $0x58] sm:$0xff]
    %v122 = vld [vmem:[#allocation8 + $0x60] sm:$0xff]
    %v123 = vld [vmem:[#allocation8 + $0x68] sm:$0xff]
    %v124 = vld [vmem:[#allocation8 + $0x70] sm:$0xff]
    %v125 = vld [vmem:[#allocation8 + $0x78] sm:$0xff]
    %v126 = vld [vmem:[#allocation8 + $0x80] sm:$0xff]
    %v127 = vld [vmem:[#allocation8 + $0x88] sm:$0xff]
    %v128 = vld [vmem:[#allocation8 + $0x90] sm:$0xff]
    %v129 = vld [vmem:[#allocation8 + $0x98] sm:$0xff]
    %v130 = vld [vmem:[#allocation8 + $0xa0] sm:$0xff]
    %v131 = vld [vmem:[#allocation8 + $0xa8] sm:$0xff]
    %v132 = vld [vmem:[#allocation8 + $0xb0] sm:$0xff]
    %v133 = vld [vmem:[#allocation8 + $0xb8] sm:$0xff]
    %v134 = vld [vmem:[#allocation8 + $0xc0] sm:$0xff]
    %v135 = vld [vmem:[#allocation8 + $0xc8] sm:$0xff]
    %v136 = vld [vmem:[#allocation8 + $0xd0] sm:$0xff]
    %v137 = vld [vmem:[#allocation8 + $0xd8] sm:$0xff]
    %v138 = vld [vmem:[#allocation8 + $0xe0] sm:$0xff]
    %v139 = vld [vmem:[#allocation8 + $0xe8] sm:$0xff]
    %v140 = vld [vmem:[#allocation8 + $0xf0] sm:$0xff]
    %v141 = vld [vmem:[#allocation8 + $0xf8] sm:$0xff]
    %v142 = vld [vmem:[%s4] sm:$0x3]
    %v144 = vlaneseq
    %v145 = vshrl.u32 %v144, 7
    %v146 = vsub.s32 0, %v145
    %v147 = vrot.slane %v142, %v146
    %v148 = vlaneseq
    %v149 = vshrl.u32 %v148, 7
    %v150 = vsub.s32 1, %v149
    %v151 = vrot.slane %v142, %v150
    %154 = vmatprep.subr.mxu0 %v141
    %155 = vmatpush1.msra.mxu0 %v140
    %156 = vmatprep.subr.mxu0 %v139
    %157 = vmatpush1.msra.mxu0 %v138
    %158 = vmatprep.subr.mxu0 %v137
    %159 = vmatpush1.msra.mxu0 %v136
    %160 = vmatprep.subr.mxu0 %v135
    %161 = vmatpush1.msra.mxu0 %v134
    %162 = vmatprep.subr.mxu0 %v133
    %163 = vmatpush1.msra.mxu0 %v132
    %164 = vmatprep.subr.mxu0 %v131
    %165 = vmatpush1.msra.mxu0 %v130
    %166 = vmatprep.subr.mxu0 %v129
    %167 = vmatpush1.msra.mxu0 %v128
    %168 = vmatprep.subr.mxu0 %v127
    %169 = vmatpush1.msra.mxu0 %v126
    %170 = vmatprep.subr.mxu0 %v125
    %171 = vmatpush1.msra.mxu0 %v124
    %172 = vmatprep.subr.mxu0 %v123
    %173 = vmatpush1.msra.mxu0 %v122
    %174 = vmatprep.subr.mxu0 %v121
    %175 = vmatpush1.msra.mxu0 %v120
    %176 = vmatprep.subr.mxu0 %v119
    %177 = vmatpush1.msra.mxu0 %v118
    %178 = vmatprep.subr.mxu0 %v117
    %179 = vmatpush1.msra.mxu0 %v116
    %180 = vmatprep.subr.mxu0 %v115
    %181 = vmatpush1.msra.mxu0 %v114
    %182 = vmatprep.subr.mxu0 %v113
    %183 = vmatpush1.msra.mxu0 %v112
    %184 = vmatprep.subr.mxu0 %v111
    %185 = vmatpush1.msra.mxu0 %v110
    %186 = vmatprep.subr.mxu0 0.0
    %187 = vmatpush2.msra.mxu0 0.0
    %188 = vmatprep.subr.mxu0 0.0
    %189 = vmatpush2.msra.mxu0 0.0
    %190 = vmatprep.subr.mxu0 0.0
    %191 = vmatpush2.msra.mxu0 0.0
    %192 = vmatprep.subr.mxu0 0.0
    %193 = vmatpush2.msra.mxu0 0.0
    %194 = vmatprep.subr.mxu0 0.0
    %195 = vmatpush2.msra.mxu0 0.0
    %196 = vmatprep.subr.mxu0 0.0
    %197 = vmatpush2.msra.mxu0 0.0
    %198 = vmatprep.subr.mxu0 0.0
    %199 = vmatpush2.msra.mxu0 0.0
    %200 = vmatprep.subr.mxu0 0.0
    %201 = vmatpush2.msra.mxu0 0.0
    %202 = vmatprep.subr.mxu0 0.0
    %203 = vmatpush2.msra.mxu0 0.0
    %204 = vmatprep.subr.mxu0 0.0
    %205 = vmatpush2.msra.mxu0 0.0
    %206 = vmatprep.subr.mxu0 0.0
    %207 = vmatpush2.msra.mxu0 0.0
    %208 = vmatprep.subr.mxu0 0.0
    %209 = vmatpush2.msra.mxu0 0.0
    %210 = vmatprep.subr.mxu0 0.0
    %211 = vmatpush2.msra.mxu0 0.0
    %212 = vmatprep.subr.mxu0 0.0
    %213 = vmatpush2.msra.mxu0 0.0
    %214 = vmatprep.subr.mxu0 0.0
    %215 = vmatpush2.msra.mxu0 0.0
    %216 = vmatprep.subr.mxu0 0.0
    %217 = vmatpush2.msra.mxu0 0.0
    %218 = vmatprep.mubr.f32.mxu0 0.0
    %219 = vmatmul.mubr.f32.gmra.mxu0 %v108
    %v220 = vpop.f32.mrf.mxu0
    %v221 = vadd.f32 %v147, %v220
    %v222 = vpop.f32.mrf.mxu0
    %v223 = vadd.f32 %v151, %v222
    %224 = vmatprep.mubr.f32.mxu0 0.0
    %225 = vmatmul.mubr.f32.gmra.mxu0 %v109
    %v226 = vpop.f32.mrf.mxu0
    %v227 = vadd.f32 %v147, %v226
    %v228 = vpop.f32.mrf.mxu0
    %v229 = vadd.f32 %v151, %v228
    %230 = vdwg.mxu0
    %231 = vst [vmem:[#allocation9] sm:$0xff] %v221
    %232 = vst [vmem:[#allocation9 + $0x8] sm:$0xff] %v223
    %233 = vst [vmem:[#allocation9 + $0x10] sm:$0xff] %v227
    %234 = vst [vmem:[#allocation9 + $0x18] sm:$0xff] %v229
    // Predicated region
    $region38: #{tpu_custom_call.1} parent=1 // pred_check
      _
    $region39: #{tpu_custom_call.1} parent=1 // pred_check_branch
      %236 = sbr.rel (0) target = $region41
    $region40: #{tpu_custom_call.1} parent=1 // pred_region
      %s238 = ssub.s32 512, 512
      %239 = vsyncadd [#allocation5], %s238
      %s240 = sshll.u32 [#allocation9], 4
      %s241 = int_to_ptr.vmem [resolvable:$true] %s240
      %246 = dma.vmem_to_hbm [thread:$0]  %s241, 512, %s5, [#allocation5], 256, 256, 16
    $region41: #{tpu_custom_call.1} parent=1 // pred_fallthru
      _
    // Predicated region
    $region42: #{tpu_custom_call.1} parent=1 // pred_check
      _
    $region43: #{tpu_custom_call.1} parent=1 // pred_check_branch
      %248 = sbr.rel (0) target = $region45
    $region44: #{tpu_custom_call.1} parent=1 // pred_region
      %249 = dma.done [#allocation5], 512
    $region45: #{tpu_custom_call.1} parent=1 // pred_fallthru
      _
    %250 = vsyncpa [#allocation4], 1
    %251 = vsyncpa [#allocation7], 1
    %252 = vsyncpa [#allocation5], 1

</llo_original>
